<compile_context>
chip_gen: v6e
topology: v6e:2x2x1
jax: 0.10.0
libtpu: 0.0.40
codegen_flags: <defaults>
</compile_context>

<pallas_src>
import functools

import jax
import jax.numpy as jnp
from jax.experimental import pallas as pl
from jax.experimental.pallas import tpu as pltpu

D = 256          # model dim (fixed by nn.Parameter(1, 256))
HEADS = 8
DIM_HEAD = 32
MLP = 1024
DEPTH = 6
SEQ = 6          # 1 "k" token + 5 input embeddings
SCALE = DIM_HEAD ** (-0.5)
LN_EPS = 1e-5


# ----------------------------- small math helpers ---------------------------
def _round_up(a, m):
    return ((a + m - 1) // m) * m


def _erf(x):
    # Abramowitz & Stegun 7.1.26 polynomial erf (|err| < 1.5e-7): matches
    # PyTorch's exact (erf-based) nn.GELU to ~float32 precision.
    p = 0.3275911
    a1, a2, a3, a4, a5 = (0.254829592, -0.284496736, 1.421413741,
                          -1.453152027, 1.061405429)
    ax = jnp.abs(x)
    t = 1.0 / (1.0 + p * ax)
    poly = ((((a5 * t + a4) * t + a3) * t + a2) * t + a1) * t
    y = 1.0 - poly * jnp.exp(-ax * ax)
    return jnp.where(x >= 0, y, -y)


def _gelu_exact(x):
    return 0.5 * x * (1.0 + _erf(x * 0.7071067811865475))


def _gelu_tanh(x):
    # tanh approximation (EUP): used on the bf16 fast path only.
    c = 0.7978845608028654
    return 0.5 * x * (1.0 + jnp.tanh(c * (x + 0.044715 * x * x * x)))


def _layernorm(x, w, b):
    mu = jnp.mean(x, axis=-1, keepdims=True)
    xc = x - mu
    var = jnp.mean(xc * xc, axis=-1, keepdims=True)
    return xc * jax.lax.rsqrt(var + LN_EPS) * w + b


# --------------------------- roll-direction probe ----------------------------
_ROLL_PROBE = {}


def _roll_moves_up():
    """True if pltpu.roll(x, +s, axis) moves data toward higher indices
    (jnp.roll convention: out[..., i] = x[..., i - s]).  Probed once so the
    head segment-sum / broadcast butterflies are robust to either convention.
    """
    if 'fwd' not in _ROLL_PROBE:
        def probe(x_ref, o_ref):
            o_ref[...] = pltpu.roll(x_ref[...], 1, 1)

        x = jax.lax.broadcasted_iota(jnp.float32, (8, 128), 1)
        y = pl.pallas_call(
            probe, out_shape=jax.ShapeDtypeStruct((8, 128), jnp.float32))(x)
        _ROLL_PROBE['fwd'] = bool(jax.device_get(y)[0, 1] == 0.0)
    return _ROLL_PROBE['fwd']


# ------------------------- lane butterflies (per head) -----------------------
def _segsum_to_lane(x):
    # 5-step roll+add: leaves, in one lane of every 32-lane head group, the
    # sum over that group (which lane depends on the roll convention; the
    # other lanes hold sliding-window garbage that is masked later).
    for s in (1, 2, 4, 8, 16):
        x = x + pltpu.roll(x, s, 1)
    return x


def _broadcast_from_lane(x):
    # Mirrored 5-step butterfly (shifts D-s == -s): broadcasts the single
    # non-zero lane of each 32-lane head group to all 32 lanes of the group.
    for s in (1, 2, 4, 8, 16):
        x = x + pltpu.roll(x, D - s, 1)
    return x


# --------------------------------- kernel -----------------------------------
def transformer_kernel(x_ref,
                       ln1_w_ref, ln1_b_ref, wqkv_ref,
                       wo_ref, bo_ref,
                       ln2_w_ref, ln2_b_ref,
                       w1_ref, b1_ref, w2_ref, b2_ref,
                       o_ref, *, bn, fast, sum_lane):
    # Grid: (anchor_block,).  x_ref / o_ref are (SEQ, bn, D) f32 token-major
    # blocks; the 6-layer transformer runs in a fori_loop over the resident
    # per-layer weight stacks (DEPTH, ...).
    rb = SEQ * bn
    cdt = wqkv_ref.dtype                           # bf16 (fast) or f32

    lane = jax.lax.broadcasted_iota(jnp.int32, (1, D), 1)
    head_slot = (lane & (DIM_HEAD - 1)) == sum_lane    # valid lane per head

    x0 = x_ref[...].reshape(rb, D)                 # (rb, D) f32 residual

    def layer_body(layer, x):
        # ---------------- PreNorm + Multi-Head Self-Attention ----------------
        xn = _layernorm(x, ln1_w_ref[layer], ln1_b_ref[layer])
        qkv = jnp.dot(xn.astype(cdt), wqkv_ref[layer],
                      preferred_element_type=jnp.float32)        # (rb, 3D)
        q = qkv[:, 0 * D:1 * D]                     # scale folded into Wqkv
        k = qkv[:, 1 * D:2 * D]
        v = qkv[:, 2 * D:3 * D]
        q3 = q.reshape(SEQ, bn, D)

        # Per key-token scores: q*k product + in-lane head segment sum.
        s_list = []
        for j in range(SEQ):
            k_j = k[j * bn:(j + 1) * bn, :]                       # (bn, D)
            prod = (q3 * k_j[None, :, :]).reshape(rb, D)
            s_list.append(_segsum_to_lane(prod))

        m = s_list[0]
        for j in range(1, SEQ):
            m = jnp.maximum(m, s_list[j])
        e_list = [jnp.exp(s - m) for s in s_list]
        denom = e_list[0]
        for j in range(1, SEQ):
            denom = denom + e_list[j]
        inv = pl.reciprocal(denom, approx=True) if fast else 1.0 / denom

        acc = jnp.zeros((rb, D), jnp.float32)
        for j in range(SEQ):
            # keep only the valid lane of each head, then lane-broadcast the
            # softmax weight over the head's 32 lanes (no ET matmul).
            w = jnp.where(head_slot, e_list[j] * inv, 0.0)
            w = _broadcast_from_lane(w)
            v_j = v[j * bn:(j + 1) * bn, :]
            acc = acc + (w.reshape(SEQ, bn, D) * v_j[None, :, :]).reshape(rb, D)

        proj = jnp.dot(acc.astype(cdt), wo_ref[layer],
                       preferred_element_type=jnp.float32) + bo_ref[layer]
        x = x + proj

        # ---------------- PreNorm + FeedForward (GELU MLP) -------------------
        yn = _layernorm(x, ln2_w_ref[layer], ln2_b_ref[layer])
        h1 = jnp.dot(yn.astype(cdt), w1_ref[layer],
                     preferred_element_type=jnp.float32) + b1_ref[layer]
        h1 = _gelu_tanh(h1) if fast else _gelu_exact(h1)
        h2 = jnp.dot(h1.astype(cdt), w2_ref[layer],
                     preferred_element_type=jnp.float32) + b2_ref[layer]
        return x + h2

    xf = jax.lax.fori_loop(0, DEPTH, layer_body, x0)
    o_ref[...] = xf.reshape(SEQ, bn, D)


# --------------------------------- wrapper ----------------------------------
def transformer_k_encoder(params, before_align, after_align, anchor,
                          cached_k_pred, ego, *,
                          block_n=128, compute_dtype=jnp.bfloat16):
    """Forward pass of Transformer_k_encoder. All five inputs are (N, 256)."""
    n = before_align.shape[0]
    cdt = jnp.dtype(compute_dtype)
    fast = cdt != jnp.dtype(jnp.float32)

    # Token-major activation layout: (SEQ, n_pad, D), anchor is second-minor.
    k_tok = jnp.broadcast_to(params['k'].astype(jnp.float32), (n, D))
    x = jnp.stack([k_tok, before_align, after_align, anchor,
                   cached_k_pred, ego], axis=0).astype(jnp.float32)

    # Anchor-block size: multiple of 8, no larger than the real anchor count,
    # and split into >=2 blocks when there is enough work (v7x megacore).
    n8 = _round_up(n, 8)
    bn = min(block_n, n8)
    if n8 <= bn and n8 >= 64:
        bn = _round_up((n8 + 1) // 2, 8)
    n_blocks = -(-n8 // bn)
    n_pad = n_blocks * bn
    if n_pad != n:
        x = jnp.pad(x, ((0, 0), (0, n_pad - n), (0, 0)))

    # Fold the attention scale into the Q columns of Wqkv.
    qkv_scale = jnp.concatenate(
        [jnp.full((D,), SCALE, jnp.float32), jnp.ones((2 * D,), jnp.float32)])
    as_f32 = lambda a: a.astype(jnp.float32)
    w_args = (as_f32(params['ln1_w']), as_f32(params['ln1_b']),
              (params['wqkv'].astype(jnp.float32) * qkv_scale).astype(cdt),
              params['wo'].astype(cdt), as_f32(params['bo']),
              as_f32(params['ln2_w']), as_f32(params['ln2_b']),
              params['w1'].astype(cdt), as_f32(params['b1']),
              params['w2'].astype(cdt), as_f32(params['b2']))

    io_spec = pl.BlockSpec((SEQ, bn, D), lambda i: (0, i, 0))

    def w_spec(r, c):
        # Full (DEPTH, r, c) stack, grid-resident (constant block index) and
        # single-buffered: fetched from HBM exactly once.
        try:
            return pl.BlockSpec((DEPTH, r, c), lambda i: (0, 0, 0),
                                pipeline_mode=pl.Buffered(1))
        except (TypeError, AttributeError):
            return pl.BlockSpec((DEPTH, r, c), lambda i: (0, 0, 0))

    w_specs = [w_spec(1, D), w_spec(1, D), w_spec(D, 3 * D),
               w_spec(D, D), w_spec(1, D),
               w_spec(1, D), w_spec(1, D),
               w_spec(D, MLP), w_spec(1, MLP),
               w_spec(MLP, D), w_spec(1, D)]

    rb = SEQ * bn
    w_bytes = sum(int(a.size) * a.dtype.itemsize for a in w_args)
    act_block = rb * D * 4
    # qkv + h1 + attention temporaries (scores / exps / weights), f32.
    interm = rb * (3 * D + MLP) * 4 + 16 * rb * D * 4
    vmem_limit = int(w_bytes + 4 * act_block + interm + 6 * 2 ** 20)
    vmem_limit = max(min(vmem_limit, 60 * 2 ** 20), 16 * 2 ** 20)

    gemm_flops = 2 * n_pad * SEQ * DEPTH * (D * 3 * D + D * D + 2 * D * MLP)
    cost = pl.CostEstimate(
        flops=int(gemm_flops),
        transcendentals=int(n_pad * DEPTH * SEQ * (SEQ * D + MLP + D)),
        bytes_accessed=int(2 * n_pad * SEQ * D * 4 + w_bytes))

    kernel = functools.partial(
        transformer_kernel, bn=bn, fast=fast,
        sum_lane=(DIM_HEAD - 1) if _roll_moves_up() else 0)

    out = pl.pallas_call(
        kernel,
        out_shape=jax.ShapeDtypeStruct((SEQ, n_pad, D), jnp.float32),
        grid_spec=pltpu.PrefetchScalarGridSpec(
            num_scalar_prefetch=0,
            grid=(n_blocks,),
            in_specs=[io_spec] + w_specs,
            out_specs=io_spec),
        compiler_params=pltpu.CompilerParams(
            dimension_semantics=("parallel",),
            vmem_limit_bytes=vmem_limit),
        cost_estimate=cost,
    )(x, *w_args)

    # back to (num_anchor, SEQ, D) anchor-major order, drop padding.
    return jnp.transpose(out, (1, 0, 2))[:n]


# ------------------------------ params / reference --------------------------
def init_params(key):
    """Deterministic synthetic parameters; shapes follow the torch module."""
    keys = jax.random.split(key, 1 + DEPTH)
    k_param = jax.random.normal(keys[0], (1, D), jnp.float32)

    def uniform(k, shape, fan_in):
        bound = 1.0 / (fan_in ** 0.5)
        return jax.random.uniform(k, shape, jnp.float32, -bound, bound)

    lists = {name: [] for name in
             ('ln1_w', 'ln1_b', 'wqkv', 'wo', 'bo',
              'ln2_w', 'ln2_b', 'w1', 'b1', 'w2', 'b2')}
    for l in range(DEPTH):
        sub = jax.random.split(keys[1 + l], 11)
        lists['ln1_w'].append(1.0 + 0.1 * jax.random.normal(sub[0], (1, D), jnp.float32))
        lists['ln1_b'].append(0.1 * jax.random.normal(sub[1], (1, D), jnp.float32))
        lists['wqkv'].append(uniform(sub[2], (D, 3 * D), D))        # Linear(D, 3D, bias=False)
        lists['wo'].append(uniform(sub[3], (D, D), D))              # Linear(D, D)
        lists['bo'].append(uniform(sub[4], (1, D), D))
        lists['ln2_w'].append(1.0 + 0.1 * jax.random.normal(sub[5], (1, D), jnp.float32))
        lists['ln2_b'].append(0.1 * jax.random.normal(sub[6], (1, D), jnp.float32))
        lists['w1'].append(uniform(sub[7], (D, MLP), D))            # Linear(D, MLP)
        lists['b1'].append(uniform(sub[8], (1, MLP), D))
        lists['w2'].append(uniform(sub[9], (MLP, D), MLP))          # Linear(MLP, D)
        lists['b2'].append(uniform(sub[10], (1, D), MLP))
    params = {name: jnp.stack(vals, axis=0) for name, vals in lists.items()}
    params['k'] = k_param
    return params


def reference_forward(params, before, after, anchor, cached_k, ego):
    """Pure-JAX reference matching the PyTorch forward (dropout=0)."""
    n = before.shape[0]
    x = jnp.concatenate(
        [jnp.broadcast_to(params['k'][None], (n, 1, D)),
         jnp.stack([before, after, anchor, cached_k, ego], axis=1)], axis=1)

    def ln(t, w, b):
        mu = t.mean(-1, keepdims=True)
        var = ((t - mu) ** 2).mean(-1, keepdims=True)
        return (t - mu) / jnp.sqrt(var + LN_EPS) * w + b

    for l in range(DEPTH):
        xn = ln(x, params['ln1_w'][l, 0], params['ln1_b'][l, 0])
        qkv = xn @ params['wqkv'][l]
        q, k, v = jnp.split(qkv, 3, axis=-1)
        sh = lambda t: t.reshape(n, SEQ, HEADS, DIM_HEAD).transpose(0, 2, 1, 3)
        q, k, v = sh(q), sh(k), sh(v)
        dots = jnp.einsum('bhid,bhjd->bhij', q, k) * SCALE
        attn = jax.nn.softmax(dots, axis=-1)
        o = jnp.einsum('bhij,bhjd->bhid', attn, v)
        o = o.transpose(0, 2, 1, 3).reshape(n, SEQ, D)
        x = x + o @ params['wo'][l] + params['bo'][l, 0]

        yn = ln(x, params['ln2_w'][l, 0], params['ln2_b'][l, 0])
        h = jax.nn.gelu(yn @ params['w1'][l] + params['b1'][l, 0], approximate=False)
        x = x + h @ params['w2'][l] + params['b2'][l, 0]
    return x


# ----------------------------------- main ------------------------------------
if __name__ == "__main__":
    key = jax.random.PRNGKey(0)
    kp, kin = jax.random.split(key)
    params = init_params(kp)

    num_anchor = 10            # small; also exercises the anchor padding path
    ks = jax.random.split(kin, 5)
    before = jax.random.normal(ks[0], (num_anchor, D), jnp.float32)
    after = jax.random.normal(ks[1], (num_anchor, D), jnp.float32)
    anchor = jax.random.normal(ks[2], (num_anchor, D), jnp.float32)
    cached_k = jax.random.normal(ks[3], (num_anchor, D), jnp.float32)
    ego = jax.random.normal(ks[4], (num_anchor, D), jnp.float32)

    ref = reference_forward(params, before, after, anchor, cached_k, ego)

    # 1) precise path: f32 compute everywhere (tight check vs JAX reference)
    out_f32 = transformer_k_encoder(params, before, after, anchor, cached_k,
                                    ego, compute_dtype=jnp.float32)
    out_f32 = jax.block_until_ready(out_f32)
    assert out_f32.shape == (num_anchor, SEQ, D)
    err32 = float(jnp.max(jnp.abs(out_f32 - ref)))
    assert err32 < 5e-3, f"f32 max abs err {err32}"

    # 2) perf default: bf16 GEMM operands / weights (f32 accumulation and
    #    f32 attention elementwise math), EUP reciprocal + tanh GELU.
    out_bf16 = transformer_k_encoder(params, before, after, anchor, cached_k,
                                     ego)
    out_bf16 = jax.block_until_ready(out_bf16)
    assert out_bf16.shape == (num_anchor, SEQ, D)
    err16 = float(jnp.max(jnp.abs(out_bf16 - ref)))
    assert err16 < 1e-1, f"bf16 max abs err {err16}"

    print("KERNEL_OK")
</pallas_src>

<mosaic_0001>
module attributes {stable_mosaic.version = 11 : i64} {
  func.func @probe(%arg0: memref<8x128xf32, #tpu.memory_space<vmem>>, %arg1: memref<8x128xf32, #tpu.memory_space<vmem>>) attributes {dimension_semantics = [], scalar_prefetch = 0 : i64, scratch_operands = 0 : i64, tpu.core_type = #tpu.core_type<tc>} {
    %c0 = arith.constant 0 : index
    %c0_0 = arith.constant 0 : index
    %0 = vector.load %arg0[%c0, %c0_0] : memref<8x128xf32, #tpu.memory_space<vmem>>, vector<8x128xf32>
    %c1_i32 = arith.constant 1 : i32
    %1 = tpu.dynamic_rotate %0 by %c1_i32 dim 1 : vector<8x128xf32>, i32 -> vector<8x128xf32>
    %c0_1 = arith.constant 0 : index
    %c0_2 = arith.constant 0 : index
    %2 = vector.load %arg1[%c0_1, %c0_2] : memref<8x128xf32, #tpu.memory_space<vmem>>, vector<8x128xf32>
    tpu.vector_store %arg1[%c0_1, %c0_2], %1 {strides = array<i32>} : memref<8x128xf32, #tpu.memory_space<vmem>>, vector<8x128xf32>,
    return
  }
}

</mosaic_0001>

<llo_original>
// kernel: tpu_custom_call.1
$region0: #{tpu_custom_call.1}
  #allocation0 [shape = 'u32[]', space=smem, size = 0x4, offset = 0x4, fixed_abs, tag = 'smem constant byte address 0x4 - core index']
  #allocation1 [shape = 'u32[144,128]{1,0:T(1,128)}', space=vmem, size = 0x12000, scoped, tag = 'internal scratch']
  %s0 = inlined_call_operand.hbm [shape: f32[8,128], index: 0, kind: input, shape index: {}]
  %s1 = inlined_call_operand.hbm [shape: f32[8,128], index: 1, kind: output, shape index: {}]
  %s2 = sld [smem:[#allocation0]]
  $region18: #{tpu_custom_call.1} parent=0
    _
  %s4 = ssub.s32 1, %s2
  %s5 = scalar_select 0, %s4, %s2
  $region1: #{tpu_custom_call.1} parent=0
    #allocation2 [shape = 'u8[4096]{0}', space=vmem, size = 0x1000, scoped, tag = 'input window, operand 0, single buffered']
    #allocation3 [shape = 's32[1]{0}', space=sflag, size = 0x4, scoped, tag = 'scoped memory for tpu_custom_call.1']
    #allocation4 [shape = 's32[1]{0}', space=sflag, size = 0x4, scoped, tag = 'scoped memory for tpu_custom_call.1']
    #allocation5 [shape = 'u8[4096]{0}', space=vmem, size = 0x1000, scoped, tag = 'output window, operand 0, single buffered']
    %6 = vsyncpa [#allocation3], 0
    %7 = vsyncpa [#allocation4], 0
    // Predicated region
    $region2: #{tpu_custom_call.1} parent=1 // pred_check
      _
    $region3: #{tpu_custom_call.1} parent=1 // pred_check_branch
      %9 = sbr.rel (0) target = $region5
    $region4: #{tpu_custom_call.1} parent=1 // pred_region
      %s11 = ssub.s32 128, 128
      %12 = vsyncadd [#allocation3], %s11
      %s14 = sshll.u32 [#allocation2], 4
      %s15 = int_to_ptr.vmem [resolvable:$true] %s14
      %17 = dma.hbm_to_vmem [thread:$0]  %s0, 128, %s15, [#allocation3]
    $region5: #{tpu_custom_call.1} parent=1 // pred_fallthru
      _
    // Predicated region
    $region6: #{tpu_custom_call.1} parent=1 // pred_check
      _
    $region7: #{tpu_custom_call.1} parent=1 // pred_check_branch
      %19 = sbr.rel (0) target = $region9
    $region8: #{tpu_custom_call.1} parent=1 // pred_region
      %20 = dma.done [#allocation3], 128
    $region9: #{tpu_custom_call.1} parent=1 // pred_fallthru
      _
    %v21 = vld [vmem:[#allocation2] sm:$0xff]
    %22 = vrot.lane.b32.xlu0 %v21, 1
    %v23 = vpop.permute.xlu0 %22
    %24 = vst [vmem:[#allocation5] sm:$0xff] %v23
    // Predicated region
    $region10: #{tpu_custom_call.1} parent=1 // pred_check
      _
    $region11: #{tpu_custom_call.1} parent=1 // pred_check_branch
      %26 = sbr.rel (0) target = $region13
    $region12: #{tpu_custom_call.1} parent=1 // pred_region
      %s28 = ssub.s32 128, 128
      %29 = vsyncadd [#allocation4], %s28
      %s31 = sshll.u32 [#allocation5], 4
      %s32 = int_to_ptr.vmem [resolvable:$true] %s31
      %34 = dma.vmem_to_hbm [thread:$0]  %s32, 128, %s1, [#allocation4]
    $region13: #{tpu_custom_call.1} parent=1 // pred_fallthru
      _
    // Predicated region
    $region14: #{tpu_custom_call.1} parent=1 // pred_check
      _
    $region15: #{tpu_custom_call.1} parent=1 // pred_check_branch
      %36 = sbr.rel (0) target = $region17
    $region16: #{tpu_custom_call.1} parent=1 // pred_region
      %37 = dma.done [#allocation4], 128
    $region17: #{tpu_custom_call.1} parent=1 // pred_fallthru
      _
    %38 = vsyncpa [#allocation3], 1
    %39 = vsyncpa [#allocation4], 1

</llo_original>
